<compile_context>
chip_gen: v6e
topology: v6e:2x2x1
jax: 0.10.0
libtpu: 0.0.40
codegen_flags: <defaults>
</compile_context>

<pallas_src>
import math
from functools import partial

import jax
import jax.numpy as jnp
from jax import lax
from jax.experimental import pallas as pl
from jax.experimental.pallas import tpu as pltpu


def bert_attention_kernel(
    x_ref,        # (1, S, H)    f32 hidden states for this batch element (resident across heads)
    mask_ref,     # (1, 1, S)    f32 additive attention mask (0 / -10000)
    wqkv_ref,     # (1, H, 3dH)  bf16 fused per-head [Wq*scale | Wk | Wv]
    bqkv_ref,     # (1, 3, dH)   f32  per-head [bq*scale ; bk ; bv]
    wo_ref,       # (1, dH, H)   bf16 rows of output projection for this head
    bo_ref,       # (1, H)       f32
    gamma_ref,    # (1, H)       f32 LayerNorm weight
    beta_ref,     # (1, H)       f32 LayerNorm bias
    out_ref,      # (1, S, H)
    acc_ref,      # (S, H)       f32 scratch: sum_h ctx_h @ Wo_h
    *,
    eps: float,
):
    h = pl.program_id(1)
    n_heads = pl.num_programs(1)

    @pl.when(h == 0)
    def _init():
        acc_ref[...] = jnp.zeros_like(acc_ref)

    x = x_ref[0]                                   # (S, H) f32 (kept f32 for residual / LN)
    x_bf = x.astype(jnp.bfloat16)

    w = wqkv_ref[0]                                # (H, 3*dH) bf16
    dH = w.shape[-1] // 3

    # --- fused Q/K/V projection for this head: one MXU pass ---
    qkv = jnp.dot(x_bf, w, preferred_element_type=jnp.float32)   # (S, 3*dH) f32
    bias3 = bqkv_ref[0]                            # (3, dH) f32
    q = qkv[:, 0:dH] + bias3[0]                    # 1/sqrt(dH) already folded into Wq/bq
    k = qkv[:, dH:2 * dH] + bias3[1]
    v = qkv[:, 2 * dH:3 * dH] + bias3[2]

    # --- attention scores (S, S): contract over dH, no explicit transpose ---
    scores = lax.dot_general(
        q.astype(jnp.bfloat16), k.astype(jnp.bfloat16),
        dimension_numbers=(((1,), (1,)), ((), ())),
        preferred_element_type=jnp.float32)
    scores = scores + mask_ref[0, 0][None, :]      # additive mask, broadcast over queries

    # --- softmax with deferred normalization ---
    m = jnp.max(scores, axis=-1, keepdims=True)
    e = jnp.exp(scores - m)                        # EUP
    denom = jnp.sum(e, axis=-1, keepdims=True)     # (S, 1)

    # context for this head, normalized on the small (S, dH) tensor
    ctx = jnp.dot(e.astype(jnp.bfloat16), v.astype(jnp.bfloat16),
                  preferred_element_type=jnp.float32)             # (S, dH)
    ctx = ctx * pl.reciprocal(denom, approx=True)

    # --- fold output projection into the head loop ---
    acc_ref[...] += jnp.dot(ctx.astype(jnp.bfloat16), wo_ref[0],
                            preferred_element_type=jnp.float32)   # (S, H)

    @pl.when(h == n_heads - 1)
    def _finalize():
        y = acc_ref[...] + bo_ref[0] + x           # output bias + residual (f32)
        mu = jnp.mean(y, axis=-1, keepdims=True)
        var = jnp.mean((y - mu) ** 2, axis=-1, keepdims=True)
        y_norm = (y - mu) * lax.rsqrt(var + eps)
        out_ref[0] = (y_norm * gamma_ref[0] + beta_ref[0]).astype(out_ref.dtype)


def bert_attention(hidden_states, attention_mask, params, *, num_heads, eps=1e-12):
    B, S, H = hidden_states.shape
    dH = H // num_heads
    scale = 1.0 / math.sqrt(dH)

    # PyTorch nn.Linear stores (out, in); transpose so kernel does x @ W.
    wqT = params["wq"].T * scale      # fold softmax scale into Wq
    wkT = params["wk"].T
    wvT = params["wv"].T
    woT = params["wo"].T

    def per_head_cols(w):             # (H, H) -> (nH, H, dH): columns of head h
        return w.reshape(H, num_heads, dH).transpose(1, 0, 2)

    # Fused per-head QKV weight: (nH, H, 3*dH), bf16 (half the weight traffic).
    wqkv = jnp.concatenate(
        [per_head_cols(wqT), per_head_cols(wkT), per_head_cols(wvT)],
        axis=-1).astype(jnp.bfloat16)

    # Per-head QKV biases: (nH, 3, dH), f32 (scale folded into bq).
    bqkv = jnp.stack(
        [(params["bq"] * scale).reshape(num_heads, dH),
         params["bk"].reshape(num_heads, dH),
         params["bv"].reshape(num_heads, dH)], axis=1)

    # Output projection rows for head h: (nH, dH, H), bf16.
    wo_heads = woT.reshape(num_heads, dH, H).astype(jnp.bfloat16)

    bo = params["bo"].reshape(1, H)
    gamma = params["gamma"].reshape(1, H)
    beta = params["beta"].reshape(1, H)

    # Additive mask, broadcast over heads & query positions: (B, 1, S).
    mask = attention_mask.reshape(B, 1, S)

    kernel = partial(bert_attention_kernel, eps=eps)

    return pl.pallas_call(
        kernel,
        out_shape=jax.ShapeDtypeStruct((B, S, H), hidden_states.dtype),
        grid_spec=pltpu.PrefetchScalarGridSpec(
            num_scalar_prefetch=0,
            grid=(B, num_heads),
            in_specs=[
                pl.BlockSpec((1, S, H), lambda b, h: (b, 0, 0)),        # hidden states (resident over h)
                pl.BlockSpec((1, 1, S), lambda b, h: (b, 0, 0)),        # additive mask
                pl.BlockSpec((1, H, 3 * dH), lambda b, h: (h, 0, 0)),   # fused QKV weight slice
                pl.BlockSpec((1, 3, dH), lambda b, h: (h, 0, 0)),       # fused QKV bias slice
                pl.BlockSpec((1, dH, H), lambda b, h: (h, 0, 0)),       # Wo rows for this head
                pl.BlockSpec((1, H), lambda b, h: (0, 0)),              # bo
                pl.BlockSpec((1, H), lambda b, h: (0, 0)),              # LayerNorm gamma
                pl.BlockSpec((1, H), lambda b, h: (0, 0)),              # LayerNorm beta
            ],
            out_specs=pl.BlockSpec((1, S, H), lambda b, h: (b, 0, 0)),
            scratch_shapes=[pltpu.VMEM((S, H), jnp.float32)],
        ),
        compiler_params=pltpu.CompilerParams(
            dimension_semantics=("parallel", "arbitrary"),
            vmem_limit_bytes=48 * 1024 * 1024,   # above 16/32 MiB defaults, under v7x 64 MiB
        ),
    )(hidden_states, mask, wqkv, bqkv, wo_heads, bo, gamma, beta)


def reference_bert_attention(x, mask, params, *, num_heads, eps=1e-12):
    """Pure-JAX f32 reference matching the PyTorch module (eval mode)."""
    B, S, H = x.shape
    dH = H // num_heads

    def lin(a, w, b):
        return a @ w.T + b

    q = lin(x, params["wq"], params["bq"]).reshape(B, S, num_heads, dH).transpose(0, 2, 1, 3)
    k = lin(x, params["wk"], params["bk"]).reshape(B, S, num_heads, dH).transpose(0, 2, 1, 3)
    v = lin(x, params["wv"], params["bv"]).reshape(B, S, num_heads, dH).transpose(0, 2, 1, 3)

    scores = jnp.einsum("bhqd,bhkd->bhqk", q, k) / math.sqrt(dH)
    scores = scores + mask
    probs = jax.nn.softmax(scores, axis=-1)
    ctx = jnp.einsum("bhqk,bhkd->bhqd", probs, v)
    ctx = ctx.transpose(0, 2, 1, 3).reshape(B, S, H)

    y = lin(ctx, params["wo"], params["bo"]) + x
    mu = y.mean(-1, keepdims=True)
    var = ((y - mu) ** 2).mean(-1, keepdims=True)
    return (y - mu) / jnp.sqrt(var + eps) * params["gamma"] + params["beta"]


if __name__ == "__main__":
    B, S, H = 2, 8, 32
    num_heads = 4

    key = jax.random.PRNGKey(0)
    keys = jax.random.split(key, 12)

    scale = 0.02
    params = {
        "wq": scale * jax.random.normal(keys[0], (H, H), jnp.float32),
        "bq": scale * jax.random.normal(keys[1], (H,), jnp.float32),
        "wk": scale * jax.random.normal(keys[2], (H, H), jnp.float32),
        "bk": scale * jax.random.normal(keys[3], (H,), jnp.float32),
        "wv": scale * jax.random.normal(keys[4], (H, H), jnp.float32),
        "bv": scale * jax.random.normal(keys[5], (H,), jnp.float32),
        "wo": scale * jax.random.normal(keys[6], (H, H), jnp.float32),
        "bo": scale * jax.random.normal(keys[7], (H,), jnp.float32),
        "gamma": jnp.ones((H,), jnp.float32),
        "beta": jnp.zeros((H,), jnp.float32),
    }

    hidden_states = jax.random.normal(keys[8], (B, S, H), jnp.float32)
    # BERT-style additive mask: 0 for attend, -10000 for masked positions.
    keep = (jax.random.uniform(keys[9], (B, S)) > 0.2).astype(jnp.float32)
    attention_mask = ((1.0 - keep) * -10000.0).reshape(B, 1, 1, S)

    out = bert_attention(hidden_states, attention_mask, params, num_heads=num_heads)
    out = jax.block_until_ready(out)

    ref = reference_bert_attention(hidden_states, attention_mask, params,
                                   num_heads=num_heads)
    assert out.shape == (B, S, H)
    max_diff = float(jnp.max(jnp.abs(out - ref)))
    # bf16 matmul operands + approx reciprocal -> loosen tolerance vs pure-f32 ref.
    assert jnp.allclose(out, ref, atol=2e-2, rtol=2e-2), max_diff

    print("KERNEL_OK")
</pallas_src>

<mosaic_0001>
module attributes {stable_mosaic.version = 11 : i64} {
  func.func @bert_attention_kernel(%arg0: i32, %arg1: i32, %arg2: memref<1x8x32xf32, #tpu.memory_space<vmem>>, %arg3: memref<1x1x8xf32, #tpu.memory_space<vmem>>, %arg4: memref<1x32x24xbf16, #tpu.memory_space<vmem>>, %arg5: memref<1x3x8xf32, #tpu.memory_space<vmem>>, %arg6: memref<1x8x32xbf16, #tpu.memory_space<vmem>>, %arg7: memref<1x32xf32, #tpu.memory_space<vmem>>, %arg8: memref<1x32xf32, #tpu.memory_space<vmem>>, %arg9: memref<1x32xf32, #tpu.memory_space<vmem>>, %arg10: memref<1x8x32xf32, #tpu.memory_space<vmem>>, %arg11: memref<8x32xf32, #tpu.memory_space<vmem>>) attributes {dimension_semantics = [#tpu.dimension_semantics<parallel>, #tpu.dimension_semantics<arbitrary>], iteration_bounds = array<i64: 2, 4>, scalar_prefetch = 0 : i64, scratch_operands = 1 : i64, tpu.core_type = #tpu.core_type<tc>, window_params = [{transform_indices = @transform_0, window_bounds = array<i64: 1, 8, 32>}, {transform_indices = @transform_1, window_bounds = array<i64: 1, 1, 8>}, {transform_indices = @transform_2, window_bounds = array<i64: 1, 32, 24>}, {transform_indices = @transform_3, window_bounds = array<i64: 1, 3, 8>}, {transform_indices = @transform_4, window_bounds = array<i64: 1, 8, 32>}, {pipeline_mode = #tpu.pipeline_mode<synchronous>, transform_indices = @transform_5, window_bounds = array<i64: 1, 32>}, {pipeline_mode = #tpu.pipeline_mode<synchronous>, transform_indices = @transform_6, window_bounds = array<i64: 1, 32>}, {pipeline_mode = #tpu.pipeline_mode<synchronous>, transform_indices = @transform_7, window_bounds = array<i64: 1, 32>}, {transform_indices = @transform_8, window_bounds = array<i64: 1, 8, 32>}]} {
    %c0_i32 = arith.constant 0 : i32
    %0 = arith.cmpi eq, %arg1, %c0_i32 : i32
    %1 = arith.extui %0 : i1 to i32
    %c0_i32_0 = arith.constant 0 : i32
    %2 = arith.cmpi ne, %1, %c0_i32_0 : i32
    scf.if %2 {
      %cst_25 = arith.constant 0.000000e+00 : f32
      %60 = vector.broadcast %cst_25 : f32 to vector<8x32xf32>
      %c0_26 = arith.constant 0 : index
      %c0_27 = arith.constant 0 : index
      %61 = vector.load %arg11[%c0_26, %c0_27] : memref<8x32xf32, #tpu.memory_space<vmem>>, vector<8x32xf32>
      tpu.vector_store %arg11[%c0_26, %c0_27], %60 {strides = array<i32>} : memref<8x32xf32, #tpu.memory_space<vmem>>, vector<8x32xf32>,
    } else {
    }
    %c0 = arith.constant 0 : index
    %c0_1 = arith.constant 0 : index
    %c0_2 = arith.constant 0 : index
    %3 = vector.load %arg2[%c0, %c0_1, %c0_2] : memref<1x8x32xf32, #tpu.memory_space<vmem>>, vector<1x8x32xf32>
    %4 = vector.shape_cast %3 : vector<1x8x32xf32> to vector<8x32xf32>
    %5 = arith.truncf %4 : vector<8x32xf32> to vector<8x32xbf16>
    %c0_3 = arith.constant 0 : index
    %c0_4 = arith.constant 0 : index
    %c0_5 = arith.constant 0 : index
    %6 = vector.load %arg4[%c0_3, %c0_4, %c0_5] : memref<1x32x24xbf16, #tpu.memory_space<vmem>>, vector<1x32x24xbf16>
    %7 = vector.shape_cast %6 : vector<1x32x24xbf16> to vector<32x24xbf16>
    %cst = arith.constant dense<0.000000e+00> : vector<8x24xf32>
    %8 = tpu.matmul %5, %7, %cst {dimension_numbers = #tpu.dot_dimension_numbers<[1], [0], [0], [1], [0, 0, 1, 1], [], []>} : vector<8x32xbf16>, vector<32x24xbf16>, vector<8x24xf32> -> vector<8x24xf32>
    %c0_6 = arith.constant 0 : index
    %c0_7 = arith.constant 0 : index
    %c0_8 = arith.constant 0 : index
    %9 = vector.load %arg5[%c0_6, %c0_7, %c0_8] : memref<1x3x8xf32, #tpu.memory_space<vmem>>, vector<1x3x8xf32>
    %10 = vector.shape_cast %9 : vector<1x3x8xf32> to vector<3x8xf32>
    %11 = vector.extract_strided_slice %8 {offsets = [0, 0], sizes = [8, 8], strides = [1, 1]} : vector<8x24xf32> to vector<8x8xf32>
    %12 = vector.extract_strided_slice %10 {offsets = [0, 0], sizes = [1, 8], strides = [1, 1]} : vector<3x8xf32> to vector<1x8xf32>
    %13 = vector.shape_cast %12 : vector<1x8xf32> to vector<8xf32>
    %14 = vector.shape_cast %13 : vector<8xf32> to vector<1x8xf32>
    %15 = vector.broadcast %14 : vector<1x8xf32> to vector<8x8xf32>
    %16 = arith.addf %11, %15 : vector<8x8xf32>
    %17 = vector.extract_strided_slice %8 {offsets = [0, 8], sizes = [8, 8], strides = [1, 1]} : vector<8x24xf32> to vector<8x8xf32>
    %18 = vector.extract_strided_slice %10 {offsets = [1, 0], sizes = [1, 8], strides = [1, 1]} : vector<3x8xf32> to vector<1x8xf32>
    %19 = vector.shape_cast %18 : vector<1x8xf32> to vector<8xf32>
    %20 = vector.shape_cast %19 : vector<8xf32> to vector<1x8xf32>
    %21 = vector.broadcast %20 : vector<1x8xf32> to vector<8x8xf32>
    %22 = arith.addf %17, %21 : vector<8x8xf32>
    %23 = vector.extract_strided_slice %8 {offsets = [0, 16], sizes = [8, 8], strides = [1, 1]} : vector<8x24xf32> to vector<8x8xf32>
    %24 = vector.extract_strided_slice %10 {offsets = [2, 0], sizes = [1, 8], strides = [1, 1]} : vector<3x8xf32> to vector<1x8xf32>
    %25 = vector.shape_cast %24 : vector<1x8xf32> to vector<8xf32>
    %26 = vector.shape_cast %25 : vector<8xf32> to vector<1x8xf32>
    %27 = vector.broadcast %26 : vector<1x8xf32> to vector<8x8xf32>
    %28 = arith.addf %23, %27 : vector<8x8xf32>
    %29 = arith.truncf %16 : vector<8x8xf32> to vector<8x8xbf16>
    %30 = arith.truncf %22 : vector<8x8xf32> to vector<8x8xbf16>
    %cst_9 = arith.constant dense<0.000000e+00> : vector<8x8xf32>
    %31 = tpu.matmul %29, %30, %cst_9 {dimension_numbers = #tpu.dot_dimension_numbers<[1], [1], [0], [0], [0, 0, 1, 0], [], []>} : vector<8x8xbf16>, vector<8x8xbf16>, vector<8x8xf32> -> vector<8x8xf32>
    %c0_10 = arith.constant 0 : index
    %c0_11 = arith.constant 0 : index
    %c0_12 = arith.constant 0 : index
    %32 = vector.load %arg3[%c0_10, %c0_11, %c0_12] : memref<1x1x8xf32, #tpu.memory_space<vmem>>, vector<1x1x8xf32>
    %33 = vector.shape_cast %32 : vector<1x1x8xf32> to vector<8xf32>
    %34 = vector.shape_cast %33 : vector<8xf32> to vector<1x8xf32>
    %35 = vector.broadcast %34 : vector<1x8xf32> to vector<8x8xf32>
    %36 = arith.addf %31, %35 : vector<8x8xf32>
    %cst_13 = arith.constant dense<0xFF800000> : vector<8xf32>
    %37 = vector.multi_reduction <maximumf>, %36, %cst_13 [1] : vector<8x8xf32> to vector<8xf32>
    %38 = vector.shape_cast %37 : vector<8xf32> to vector<8x1xf32>
    %39 = vector.broadcast %38 : vector<8x1xf32> to vector<8x8xf32>
    %40 = arith.subf %36, %39 : vector<8x8xf32>
    %41 = math.exp %40 : vector<8x8xf32>
    %cst_14 = arith.constant dense<0.000000e+00> : vector<8xf32>
    %42 = vector.multi_reduction <add>, %41, %cst_14 [1] : vector<8x8xf32> to vector<8xf32>
    %43 = vector.shape_cast %42 : vector<8xf32> to vector<8x1xf32>
    %44 = arith.truncf %41 : vector<8x8xf32> to vector<8x8xbf16>
    %45 = arith.truncf %28 : vector<8x8xf32> to vector<8x8xbf16>
    %cst_15 = arith.constant dense<0.000000e+00> : vector<8x8xf32>
    %46 = tpu.matmul %44, %45, %cst_15 {dimension_numbers = #tpu.dot_dimension_numbers<[1], [0], [0], [1], [0, 0, 1, 1], [], []>} : vector<8x8xbf16>, vector<8x8xbf16>, vector<8x8xf32> -> vector<8x8xf32>
    %47 = tpu.reciprocal %43 {approx = true} : vector<8x1xf32> -> vector<8x1xf32>
    %48 = vector.broadcast %47 : vector<8x1xf32> to vector<8x8xf32>
    %49 = arith.mulf %46, %48 : vector<8x8xf32>
    %c0_16 = arith.constant 0 : index
    %c0_17 = arith.constant 0 : index
    %50 = vector.load %arg11[%c0_16, %c0_17] : memref<8x32xf32, #tpu.memory_space<vmem>>, vector<8x32xf32>
    %51 = arith.truncf %49 : vector<8x8xf32> to vector<8x8xbf16>
    %c0_18 = arith.constant 0 : index
    %c0_19 = arith.constant 0 : index
    %c0_20 = arith.constant 0 : index
    %52 = vector.load %arg6[%c0_18, %c0_19, %c0_20] : memref<1x8x32xbf16, #tpu.memory_space<vmem>>, vector<1x8x32xbf16>
    %53 = vector.shape_cast %52 : vector<1x8x32xbf16> to vector<8x32xbf16>
    %cst_21 = arith.constant dense<0.000000e+00> : vector<8x32xf32>
    %54 = tpu.matmul %51, %53, %cst_21 {dimension_numbers = #tpu.dot_dimension_numbers<[1], [0], [0], [1], [0, 0, 1, 1], [], []>} : vector<8x8xbf16>, vector<8x32xbf16>, vector<8x32xf32> -> vector<8x32xf32>
    %55 = arith.addf %50, %54 : vector<8x32xf32>
    %c0_22 = arith.constant 0 : index
    %c0_23 = arith.constant 0 : index
    %56 = vector.load %arg11[%c0_22, %c0_23] : memref<8x32xf32, #tpu.memory_space<vmem>>, vector<8x32xf32>
    tpu.vector_store %arg11[%c0_22, %c0_23], %55 {strides = array<i32>} : memref<8x32xf32, #tpu.memory_space<vmem>>, vector<8x32xf32>,
    %c3_i32 = arith.constant 3 : i32
    %57 = arith.cmpi eq, %arg1, %c3_i32 : i32
    %58 = arith.extui %57 : i1 to i32
    %c0_i32_24 = arith.constant 0 : i32
    %59 = arith.cmpi ne, %58, %c0_i32_24 : i32
    scf.if %59 {
      %c0_25 = arith.constant 0 : index
      %c0_26 = arith.constant 0 : index
      %60 = vector.load %arg11[%c0_25, %c0_26] : memref<8x32xf32, #tpu.memory_space<vmem>>, vector<8x32xf32>
      %c0_27 = arith.constant 0 : index
      %c0_28 = arith.constant 0 : index
      %61 = vector.load %arg7[%c0_27, %c0_28] : memref<1x32xf32, #tpu.memory_space<vmem>>, vector<1x32xf32>
      %62 = vector.shape_cast %61 : vector<1x32xf32> to vector<32xf32>
      %63 = vector.shape_cast %62 : vector<32xf32> to vector<1x32xf32>
      %64 = vector.broadcast %63 : vector<1x32xf32> to vector<8x32xf32>
      %65 = arith.addf %60, %64 : vector<8x32xf32>
      %66 = arith.addf %65, %4 : vector<8x32xf32>
      %cst_29 = arith.constant dense<0.000000e+00> : vector<8xf32>
      %67 = vector.multi_reduction <add>, %66, %cst_29 [1] : vector<8x32xf32> to vector<8xf32>
      %68 = vector.shape_cast %67 : vector<8xf32> to vector<8x1xf32>
      %cst_30 = arith.constant 3.200000e+01 : f32
      %69 = vector.broadcast %cst_30 : f32 to vector<8x1xf32>
      %70 = arith.divf %68, %69 : vector<8x1xf32>
      %71 = vector.broadcast %70 : vector<8x1xf32> to vector<8x32xf32>
      %72 = arith.subf %66, %71 : vector<8x32xf32>
      %73 = arith.mulf %72, %72 : vector<8x32xf32>
      %cst_31 = arith.constant dense<0.000000e+00> : vector<8xf32>
      %74 = vector.multi_reduction <add>, %73, %cst_31 [1] : vector<8x32xf32> to vector<8xf32>
      %75 = vector.shape_cast %74 : vector<8xf32> to vector<8x1xf32>
      %cst_32 = arith.constant 3.200000e+01 : f32
      %76 = vector.broadcast %cst_32 : f32 to vector<8x1xf32>
      %77 = arith.divf %75, %76 : vector<8x1xf32>
      %78 = vector.broadcast %70 : vector<8x1xf32> to vector<8x32xf32>
      %79 = arith.subf %66, %78 : vector<8x32xf32>
      %cst_33 = arith.constant 9.99999996E-13 : f32
      %80 = vector.broadcast %cst_33 : f32 to vector<8x1xf32>
      %81 = arith.addf %77, %80 : vector<8x1xf32>
      %82 = math.rsqrt %81 : vector<8x1xf32>
      %83 = vector.broadcast %82 : vector<8x1xf32> to vector<8x32xf32>
      %84 = arith.mulf %79, %83 : vector<8x32xf32>
      %c0_34 = arith.constant 0 : index
      %c0_35 = arith.constant 0 : index
      %85 = vector.load %arg8[%c0_34, %c0_35] : memref<1x32xf32, #tpu.memory_space<vmem>>, vector<1x32xf32>
      %86 = vector.shape_cast %85 : vector<1x32xf32> to vector<32xf32>
      %87 = vector.shape_cast %86 : vector<32xf32> to vector<1x32xf32>
      %88 = vector.broadcast %87 : vector<1x32xf32> to vector<8x32xf32>
      %89 = arith.mulf %84, %88 : vector<8x32xf32>
      %c0_36 = arith.constant 0 : index
      %c0_37 = arith.constant 0 : index
      %90 = vector.load %arg9[%c0_36, %c0_37] : memref<1x32xf32, #tpu.memory_space<vmem>>, vector<1x32xf32>
      %91 = vector.shape_cast %90 : vector<1x32xf32> to vector<32xf32>
      %92 = vector.shape_cast %91 : vector<32xf32> to vector<1x32xf32>
      %93 = vector.broadcast %92 : vector<1x32xf32> to vector<8x32xf32>
      %94 = arith.addf %89, %93 : vector<8x32xf32>
      %c0_38 = arith.constant 0 : index
      %c0_39 = arith.constant 0 : index
      %c0_40 = arith.constant 0 : index
      %95 = vector.load %arg10[%c0_38, %c0_39, %c0_40] : memref<1x8x32xf32, #tpu.memory_space<vmem>>, vector<1x8x32xf32>
      %96 = vector.shape_cast %95 : vector<1x8x32xf32> to vector<8x32xf32>
      %97 = vector.shape_cast %94 : vector<8x32xf32> to vector<1x8x32xf32>
      tpu.vector_store %arg10[%c0_38, %c0_39, %c0_40], %97 {strides = array<i32>} : memref<1x8x32xf32, #tpu.memory_space<vmem>>, vector<1x8x32xf32>,
    } else {
    }
    return
  }
  func.func @transform_0(%arg0: i32, %arg1: i32) -> (i32, i32, i32) {
    %c0_i32 = arith.constant 0 : i32
    %c0_i32_0 = arith.constant 0 : i32
    %c0_i32_1 = arith.constant 0 : i32
    return %arg0, %c0_i32, %c0_i32_0 : i32, i32, i32
  }
  func.func @transform_1(%arg0: i32, %arg1: i32) -> (i32, i32, i32) {
    %c0_i32 = arith.constant 0 : i32
    %c0_i32_0 = arith.constant 0 : i32
    %c0_i32_1 = arith.constant 0 : i32
    return %arg0, %c0_i32, %c0_i32_0 : i32, i32, i32
  }
  func.func @transform_2(%arg0: i32, %arg1: i32) -> (i32, i32, i32) {
    %c0_i32 = arith.constant 0 : i32
    %c0_i32_0 = arith.constant 0 : i32
    %c0_i32_1 = arith.constant 0 : i32
    return %arg1, %c0_i32, %c0_i32_0 : i32, i32, i32
  }
  func.func @transform_3(%arg0: i32, %arg1: i32) -> (i32, i32, i32) {
    %c0_i32 = arith.constant 0 : i32
    %c0_i32_0 = arith.constant 0 : i32
    %c0_i32_1 = arith.constant 0 : i32
    return %arg1, %c0_i32, %c0_i32_0 : i32, i32, i32
  }
  func.func @transform_4(%arg0: i32, %arg1: i32) -> (i32, i32, i32) {
    %c0_i32 = arith.constant 0 : i32
    %c0_i32_0 = arith.constant 0 : i32
    %c0_i32_1 = arith.constant 0 : i32
    return %arg1, %c0_i32, %c0_i32_0 : i32, i32, i32
  }
  func.func @transform_5(%arg0: i32, %arg1: i32) -> (i32, i32) {
    %c0_i32 = arith.constant 0 : i32
    %c0_i32_0 = arith.constant 0 : i32
    %c0_i32_1 = arith.constant 0 : i32
    return %c0_i32, %c0_i32_0 : i32, i32
  }
  func.func @transform_6(%arg0: i32, %arg1: i32) -> (i32, i32) {
    %c0_i32 = arith.constant 0 : i32
    %c0_i32_0 = arith.constant 0 : i32
    %c0_i32_1 = arith.constant 0 : i32
    return %c0_i32, %c0_i32_0 : i32, i32
  }
  func.func @transform_7(%arg0: i32, %arg1: i32) -> (i32, i32) {
    %c0_i32 = arith.constant 0 : i32
    %c0_i32_0 = arith.constant 0 : i32
    %c0_i32_1 = arith.constant 0 : i32
    return %c0_i32, %c0_i32_0 : i32, i32
  }
  func.func @transform_8(%arg0: i32, %arg1: i32) -> (i32, i32, i32) {
    %c0_i32 = arith.constant 0 : i32
    %c0_i32_0 = arith.constant 0 : i32
    %c0_i32_1 = arith.constant 0 : i32
    return %arg0, %c0_i32, %c0_i32_0 : i32, i32, i32
  }
}

</mosaic_0001>

<llo_original>
// kernel: tpu_custom_call.1
$region0: #{tpu_custom_call.1}
  #allocation0 [shape = 'u32[]', space=smem, size = 0x4, offset = 0x4, fixed_abs, tag = 'smem constant byte address 0x4 - core index']
  #allocation1 [shape = 'u32[144,128]{1,0:T(1,128)}', space=vmem, size = 0x12000, scoped, tag = 'internal scratch']
  #allocation2 [shape = 'f32[8,32]{1,0:T(8,128)}', space=vmem, size = 0x1000, scoped, tag = 'scratch operand']
  %s0 = inlined_call_operand.vmem [shape: f32[2,8,32], index: 0, kind: input, shape index: {}]
  %s1 = inlined_call_operand.vmem [shape: f32[2,1,8], index: 1, kind: input, shape index: {}]
  %s2 = inlined_call_operand.vmem [shape: bf16[4,32,24], index: 2, kind: input, shape index: {}]
  %s3 = inlined_call_operand.vmem [shape: f32[4,3,8], index: 3, kind: input, shape index: {}]
  %s4 = inlined_call_operand.vmem [shape: bf16[4,8,32], index: 4, kind: input, shape index: {}]
  %s5 = inlined_call_operand.vmem [shape: f32[1,32], index: 5, kind: input, shape index: {}]
  %s6 = inlined_call_operand.vmem [shape: f32[1,32], index: 6, kind: input, shape index: {}]
  %s7 = inlined_call_operand.vmem [shape: f32[1,32], index: 7, kind: input, shape index: {}]
  %s8 = inlined_call_operand.hbm [shape: f32[2,8,32], index: 8, kind: output, shape index: {}]
  %s9 = sld [smem:[#allocation0]]
  $region73: #{tpu_custom_call.1} parent=0
    _
  %s11 = ssub.s32 1, %s9
  %s12 = scalar_select 0, %s11, %s9
  $region1: #{tpu_custom_call.1} parent=0
    #allocation3 [shape = 'u8[8192]{0}', space=vmem, size = 0x2000, scoped, tag = 'output window, operand 0']
    #allocation4 [shape = 's32[2]{0}', space=sflag, size = 0x8, scoped, tag = 'scoped memory for tpu_custom_call.1']
    %13 = vsyncpa [#allocation4], 0
    %s14 = scalar_lea.sflag [#allocation4], 1
    %15 = vsyncpa %s14, 0
    loop: start=0, step=1, limit=10
    $region2: #{tpu_custom_call.1} parent=1 // loop_pre_header
      _
    $region3: #{tpu_custom_call.1} parent=1 // loop_header
      %s17 = sphi 0, %s21
      %p18 = scmp.ge.s32.totalorder %s17, 10
      %s24 = sphi 0, %s36
      %s25 = sphi 0, %s32
      %s26 = sphi 0, %s24
      %s27 = sphi 0, %s25
      %s28 = sphi 0, %s26
      %s29 = sphi 0, %s27
      %s39 = sphi 0, %s41
      %s42 = sphi 0, %s39
      %s43 = sphi 0, %s42
      %s59 = sphi 0, %s43
      %s65 = sphi 0, %s67
      %s68 = sphi 0, %s65
      %s69 = sphi 0, %s68
      %s85 = sphi 0, %s69
      %s91 = sphi 0, %s93
      %s94 = sphi 0, %s91
      %s95 = sphi 0, %s94
      %s111 = sphi 0, %s95
      %s117 = sphi 0, %s119
      %s120 = sphi 0, %s117
      %s121 = sphi 0, %s120
      %s137 = sphi 0, %s121
      %s143 = sphi 0, %s145
      %s146 = sphi 0, %s143
      %s147 = sphi 0, %s146
      %s163 = sphi 0, %s147
      %s167 = sphi 0, %s167
      %s169 = sphi 0, %s167
      %s170 = sphi 0, %s169
      %s184 = sphi 0, %s170
      %s188 = sphi 0, %s188
      %s190 = sphi 0, %s188
      %s191 = sphi 0, %s190
      %s205 = sphi 0, %s191
      %s209 = sphi 0, %s209
      %s211 = sphi 0, %s209
      %s212 = sphi 0, %s211
      %s226 = sphi 0, %s212
      %s232 = sphi 0, %s234
      %s235 = sphi 0, %s232
      %s236 = sphi 0, %s235
      %s252 = sphi 0, %s236
    $region4: #{tpu_custom_call.1} parent=1 // loop_header_branch
      %20 = sbr.rel (%p18) target = $region8
    $region5: #{tpu_custom_call.1} parent=1 // loop_body
      %s22 = ssub.s32 %s17, 1
      %s23 = ssub.s32 %s17, 2
      %s30 = sadd.s32 1, %s25
      %p31 = scmp.ge.s32.totalorder %s30, 4
      %s32 = scalar_select %p31, 0, %s30
      %s33 = sadd.s32 1, %s24
      %s34 = scalar_select %p31, %s33, %s24
      %p35 = scmp.ge.s32.totalorder %s34, 2
      %s36 = scalar_select %p35, 0, %s34
      %s37 = ssub.s32 %s24, %s36
      %p38 = scmp.eq.s32.totalorder %s37, 0
      %s40 = sadd.s32 %s39, 1
      %s41 = scalar_select %p38, %s39, %s40
      %p44 = pneg %p38
      %p45 = scmp.eq.s32.totalorder %s17, 7
      %p46 = por %p44, %p45
      %p47 = scmp.ne.s32.totalorder %s39, %s42
      %p48 = scmp.eq.s32.totalorder %s17, 0
      %p49 = por %p47, %p48
      %p50 = scmp.ne.s32.totalorder %s39, %s42
      %p51 = scmp.eq.s32.totalorder %s22, 7
      %p52 = por %p50, %p51
      %p53 = scmp.ne.s32.totalorder %s42, %s43
      %p54 = scmp.eq.s32.totalorder %s22, 0
      %p55 = por %p53, %p54
      %p56 = scmp.ne.s32.totalorder %s42, %s43
      %p57 = scmp.eq.s32.totalorder %s23, 7
      %p58 = por %p56, %p57
      %p60 = scmp.ne.s32.totalorder %s43, %s59
      %p61 = scmp.eq.s32.totalorder %s23, 0
      %p62 = por %p60, %p61
      %s63 = ssub.s32 %s24, %s36
      %p64 = scmp.eq.s32.totalorder %s63, 0
      %s66 = sadd.s32 %s65, 1
      %s67 = scalar_select %p64, %s65, %s66
      %p70 = pneg %p64
      %p71 = scmp.eq.s32.totalorder %s17, 7
      %p72 = por %p70, %p71
      %p73 = scmp.ne.s32.totalorder %s65, %s68
      %p74 = scmp.eq.s32.totalorder %s17, 0
      %p75 = por %p73, %p74
      %p76 = scmp.ne.s32.totalorder %s65, %s68
      %p77 = scmp.eq.s32.totalorder %s22, 7
      %p78 = por %p76, %p77
      %p79 = scmp.ne.s32.totalorder %s68, %s69
      %p80 = scmp.eq.s32.totalorder %s22, 0
      %p81 = por %p79, %p80
      %p82 = scmp.ne.s32.totalorder %s68, %s69
      %p83 = scmp.eq.s32.totalorder %s23, 7
      %p84 = por %p82, %p83
      %p86 = scmp.ne.s32.totalorder %s69, %s85
      %p87 = scmp.eq.s32.totalorder %s23, 0
      %p88 = por %p86, %p87
      %s89 = ssub.s32 %s25, %s32
      %p90 = scmp.eq.s32.totalorder %s89, 0
      %s92 = sadd.s32 %s91, 1
      %s93 = scalar_select %p90, %s91, %s92
      %p96 = pneg %p90
      %p97 = scmp.eq.s32.totalorder %s17, 7
      %p98 = por %p96, %p97
      %p99 = scmp.ne.s32.totalorder %s91, %s94
      %p100 = scmp.eq.s32.totalorder %s17, 0
      %p101 = por %p99, %p100
      %p102 = scmp.ne.s32.totalorder %s91, %s94
      %p103 = scmp.eq.s32.totalorder %s22, 7
      %p104 = por %p102, %p103
      %p105 = scmp.ne.s32.totalorder %s94, %s95
      %p106 = scmp.eq.s32.totalorder %s22, 0
      %p107 = por %p105, %p106
      %p108 = scmp.ne.s32.totalorder %s94, %s95
      %p109 = scmp.eq.s32.totalorder %s23, 7
      %p110 = por %p108, %p109
      %p112 = scmp.ne.s32.totalorder %s95, %s111
      %p113 = scmp.eq.s32.totalorder %s23, 0
      %p114 = por %p112, %p113
      %s115 = ssub.s32 %s25, %s32
      %p116 = scmp.eq.s32.totalorder %s115, 0
      %s118 = sadd.s32 %s117, 1
      %s119 = scalar_select %p116, %s117, %s118
      %p122 = pneg %p116
      %p123 = scmp.eq.s32.totalorder %s17, 7
      %p124 = por %p122, %p123
      %p125 = scmp.ne.s32.totalorder %s117, %s120
      %p126 = scmp.eq.s32.totalorder %s17, 0
      %p127 = por %p125, %p126
      %p128 = scmp.ne.s32.totalorder %s117, %s120
      %p129 = scmp.eq.s32.totalorder %s22, 7
      %p130 = por %p128, %p129
      %p131 = scmp.ne.s32.totalorder %s120, %s121
      %p132 = scmp.eq.s32.totalorder %s22, 0
      %p133 = por %p131, %p132
      %p134 = scmp.ne.s32.totalorder %s120, %s121
      %p135 = scmp.eq.s32.totalorder %s23, 7
      %p136 = por %p134, %p135
      %p138 = scmp.ne.s32.totalorder %s121, %s137
      %p139 = scmp.eq.s32.totalorder %s23, 0
      %p140 = por %p138, %p139
      %s141 = ssub.s32 %s25, %s32
      %p142 = scmp.eq.s32.totalorder %s141, 0
      %s144 = sadd.s32 %s143, 1
      %s145 = scalar_select %p142, %s143, %s144
      %p148 = pneg %p142
      %p149 = scmp.eq.s32.totalorder %s17, 7
      %p150 = por %p148, %p149
      %p151 = scmp.ne.s32.totalorder %s143, %s146
      %p152 = scmp.eq.s32.totalorder %s17, 0
      %p153 = por %p151, %p152
      %p154 = scmp.ne.s32.totalorder %s143, %s146
      %p155 = scmp.eq.s32.totalorder %s22, 7
      %p156 = por %p154, %p155
      %p157 = scmp.ne.s32.totalorder %s146, %s147
      %p158 = scmp.eq.s32.totalorder %s22, 0
      %p159 = por %p157, %p158
      %p160 = scmp.ne.s32.totalorder %s146, %s147
      %p161 = scmp.eq.s32.totalorder %s23, 7
      %p162 = por %p160, %p161
      %p164 = scmp.ne.s32.totalorder %s147, %s163
      %p165 = scmp.eq.s32.totalorder %s23, 0
      %p166 = por %p164, %p165
      %s168 = sadd.s32 %s167, 1
      %p171 = scmp.eq.s32.totalorder %s17, 7
      %p172 = scmp.ne.s32.totalorder %s167, %s169
      %p173 = scmp.eq.s32.totalorder %s17, 0
      %p174 = por %p172, %p173
      %p175 = scmp.ne.s32.totalorder %s167, %s169
      %p176 = scmp.eq.s32.totalorder %s22, 7
      %p177 = por %p175, %p176
      %p178 = scmp.ne.s32.totalorder %s169, %s170
      %p179 = scmp.eq.s32.totalorder %s22, 0
      %p180 = por %p178, %p179
      %p181 = scmp.ne.s32.totalorder %s169, %s170
      %p182 = scmp.eq.s32.totalorder %s23, 7
      %p183 = por %p181, %p182
      %p185 = scmp.ne.s32.totalorder %s170, %s184
      %p186 = scmp.eq.s32.totalorder %s23, 0
      %p187 = por %p185, %p186
      %s189 = sadd.s32 %s188, 1
      %p192 = scmp.eq.s32.totalorder %s17, 7
      %p193 = scmp.ne.s32.totalorder %s188, %s190
      %p194 = scmp.eq.s32.totalorder %s17, 0
      %p195 = por %p193, %p194
      %p196 = scmp.ne.s32.totalorder %s188, %s190
      %p197 = scmp.eq.s32.totalorder %s22, 7
      %p198 = por %p196, %p197
      %p199 = scmp.ne.s32.totalorder %s190, %s191
      %p200 = scmp.eq.s32.totalorder %s22, 0
      %p201 = por %p199, %p200
      %p202 = scmp.ne.s32.totalorder %s190, %s191
      %p203 = scmp.eq.s32.totalorder %s23, 7
      %p204 = por %p202, %p203
      %p206 = scmp.ne.s32.totalorder %s191, %s205
      %p207 = scmp.eq.s32.totalorder %s23, 0
      %p208 = por %p206, %p207
      %s210 = sadd.s32 %s209, 1
      %p213 = scmp.eq.s32.totalorder %s17, 7
      %p214 = scmp.ne.s32.totalorder %s209, %s211
      %p215 = scmp.eq.s32.totalorder %s17, 0
      %p216 = por %p214, %p215
      %p217 = scmp.ne.s32.totalorder %s209, %s211
      %p218 = scmp.eq.s32.totalorder %s22, 7
      %p219 = por %p217, %p218
      %p220 = scmp.ne.s32.totalorder %s211, %s212
      %p221 = scmp.eq.s32.totalorder %s22, 0
      %p222 = por %p220, %p221
      %p223 = scmp.ne.s32.totalorder %s211, %s212
      %p224 = scmp.eq.s32.totalorder %s23, 7
      %p225 = por %p223, %p224
      %p227 = scmp.ne.s32.totalorder %s212, %s226
      %p228 = scmp.eq.s32.totalorder %s23, 0
      %p229 = por %p227, %p228
      %s230 = ssub.s32 %s24, %s36
      %p231 = scmp.eq.s32.totalorder %s230, 0
      %s233 = sadd.s32 %s232, 1
      %s234 = scalar_select %p231, %s232, %s233
      %p237 = pneg %p231
      %p238 = scmp.eq.s32.totalorder %s17, 7
      %p239 = por %p237, %p238
      %p240 = scmp.ne.s32.totalorder %s232, %s235
      %p241 = scmp.eq.s32.totalorder %s17, 0
      %p242 = por %p240, %p241
      %p243 = scmp.ne.s32.totalorder %s232, %s235
      %p244 = scmp.eq.s32.totalorder %s22, 7
      %p245 = por %p243, %p244
      %p246 = scmp.ne.s32.totalorder %s235, %s236
      %p247 = scmp.eq.s32.totalorder %s22, 0
      %p248 = por %p246, %p247
      %p249 = scmp.ne.s32.totalorder %s235, %s236
      %p250 = scmp.eq.s32.totalorder %s23, 7
      %p251 = por %p249, %p250
      %p253 = scmp.ne.s32.totalorder %s236, %s252
      %p254 = scmp.eq.s32.totalorder %s23, 0
      %p255 = por %p253, %p254
      %p256 = scmp.le.s32.totalorder 1, %s17
      %p257 = scmp.lt.s32.totalorder %s17, 9
      %p258 = pnand %p256, %p257
      %p259 = pneg %p258
      // Predicated region
      $region9: #{tpu_custom_call.1} parent=5 // pred_check
        _
      $region10: #{tpu_custom_call.1} parent=5 // pred_check_branch
        %261 = sbr.rel (%p258) target = $region12
      $region11: #{tpu_custom_call.1} parent=5 // pred_region
        %s262 = ssub.s32 %s17, 1
        // Predicated region
        $region13: #{tpu_custom_call.1} parent=11 // pred_check
          %p263 = pneg %p180
        $region14: #{tpu_custom_call.1} parent=11 // pred_check_branch
          %265 = sbr.rel (%p263) target = $region16
        $region15: #{tpu_custom_call.1} parent=11 // pred_region
          _
        $region16: #{tpu_custom_call.1} parent=11 // pred_fallthru
          _
        // Predicated region
        $region17: #{tpu_custom_call.1} parent=11 // pred_check
          %p266 = pneg %p201
        $region18: #{tpu_custom_call.1} parent=11 // pred_check_branch
          %268 = sbr.rel (%p266) target = $region20
        $region19: #{tpu_custom_call.1} parent=11 // pred_region
          _
        $region20: #{tpu_custom_call.1} parent=11 // pred_fallthru
          _
        // Predicated region
        $region21: #{tpu_custom_call.1} parent=11 // pred_check
          %p269 = pneg %p222
        $region22: #{tpu_custom_call.1} parent=11 // pred_check_branch
          %271 = sbr.rel (%p269) target = $region24
        $region23: #{tpu_custom_call.1} parent=11 // pred_region
          _
        $region24: #{tpu_custom_call.1} parent=11 // pred_fallthru
          _
      $region12: #{tpu_custom_call.1} parent=5 // pred_fallthru
        _
      %p272 = scmp.lt.s32.totalorder %s17, 8
      // Predicated region
      $region25: #{tpu_custom_call.1} parent=5 // pred_check
        %p273 = pneg %p272
      $region26: #{tpu_custom_call.1} parent=5 // pred_check_branch
        %275 = sbr.rel (%p273) target = $region28
      $region27: #{tpu_custom_call.1} parent=5 // pred_region
        // Predicated region
        $region29: #{tpu_custom_call.1} parent=27 // pred_check
          %p276 = pneg %p49
        $region30: #{tpu_custom_call.1} parent=27 // pred_check_branch
          %278 = sbr.rel (%p276) target = $region32
        $region31: #{tpu_custom_call.1} parent=27 // pred_region
          %p279 = scmp.lt.s32.totalorder %s24, 1
          %s280 = scalar_select %p279, %s24, 1
          %s281 = smul.addr %s280, 8
          %s282 = scalar_lea.vmem %s0, %s281
        $region32: #{tpu_custom_call.1} parent=27 // pred_fallthru
          _
        // Predicated region
        $region33: #{tpu_custom_call.1} parent=27 // pred_check
          %p283 = pneg %p75
        $region34: #{tpu_custom_call.1} parent=27 // pred_check_branch
          %285 = sbr.rel (%p283) target = $region36
        $region35: #{tpu_custom_call.1} parent=27 // pred_region
          %p286 = scmp.lt.s32.totalorder %s24, 1
          %s287 = scalar_select %p286, %s24, 1
          %s288 = scalar_lea.vmem %s1, %s287
        $region36: #{tpu_custom_call.1} parent=27 // pred_fallthru
          _
        // Predicated region
        $region37: #{tpu_custom_call.1} parent=27 // pred_check
          %p289 = pneg %p101
        $region38: #{tpu_custom_call.1} parent=27 // pred_check_branch
          %291 = sbr.rel (%p289) target = $region40
        $region39: #{tpu_custom_call.1} parent=27 // pred_region
          %p292 = scmp.lt.s32.totalorder %s25, 3
          %s293 = scalar_select %p292, %s25, 3
          %s294 = smul.addr %s293, 4
          %s295 = smul.addr %s294, 4
          %s296 = scalar_lea.vmem %s2, %s295
        $region40: #{tpu_custom_call.1} parent=27 // pred_fallthru
          _
        // Predicated region
        $region41: #{tpu_custom_call.1} parent=27 // pred_check
          %p297 = pneg %p127
        $region42: #{tpu_custom_call.1} parent=27 // pred_check_branch
          %299 = sbr.rel (%p297) target = $region44
        $region43: #{tpu_custom_call.1} parent=27 // pred_region
          %p300 = scmp.lt.s32.totalorder %s25, 3
          %s301 = scalar_select %p300, %s25, 3
          %s302 = smul.addr %s301, 4
          %s303 = scalar_lea.vmem %s3, %s302
        $region44: #{tpu_custom_call.1} parent=27 // pred_fallthru
          _
        // Predicated region
        $region45: #{tpu_custom_call.1} parent=27 // pred_check
          %p304 = pneg %p153
        $region46: #{tpu_custom_call.1} parent=27 // pred_check_branch
          %306 = sbr.rel (%p304) target = $region48
        $region47: #{tpu_custom_call.1} parent=27 // pred_region
          %p307 = scmp.lt.s32.totalorder %s25, 3
          %s308 = scalar_select %p307, %s25, 3
          %s309 = smul.addr %s308, 4
          %s310 = scalar_lea.vmem %s4, %s309
        $region48: #{tpu_custom_call.1} parent=27 // pred_fallthru
          _
      $region28: #{tpu_custom_call.1} parent=5 // pred_fallthru
        _
      %p311 = scmp.le.s32.totalorder 1, %s17
      %p312 = scmp.lt.s32.totalorder %s17, 9
      %p313 = pnand %p311, %p312
      %p314 = pneg %p313
      // Predicated region
      $region49: #{tpu_custom_call.1} parent=5 // pred_check
        _
      $region50: #{tpu_custom_call.1} parent=5 // pred_check_branch
        %316 = sbr.rel (%p313) target = $region52
      $region51: #{tpu_custom_call.1} parent=5 // pred_region
        %s317 = ssub.s32 %s17, 1
        %p318 = scmp.lt.s32.totalorder %s26, 1
        %s319 = scalar_select %p318, %s26, 1
        %s320 = smul.addr %s319, 8
        %s321 = scalar_lea.vmem %s0, %s320
        %p322 = pneg %p55
        %p323 = pneg %p52
        %p324 = scmp.lt.s32.totalorder %s26, 1
        %s325 = scalar_select %p324, %s26, 1
        %s326 = scalar_lea.vmem %s1, %s325
        %p327 = pneg %p81
        %p328 = pneg %p78
        %p329 = scmp.lt.s32.totalorder %s27, 3
        %s330 = scalar_select %p329, %s27, 3
        %s331 = smul.addr %s330, 4
        %s332 = smul.addr %s331, 4
        %s333 = scalar_lea.vmem %s2, %s332
        %p334 = pneg %p107
        %p335 = pneg %p104
        %p336 = scmp.lt.s32.totalorder %s27, 3
        %s337 = scalar_select %p336, %s27, 3
        %s338 = smul.addr %s337, 4
        %s339 = scalar_lea.vmem %s3, %s338
        %p340 = pneg %p133
        %p341 = pneg %p130
        %p342 = scmp.lt.s32.totalorder %s27, 3
        %s343 = scalar_select %p342, %s27, 3
        %s344 = smul.addr %s343, 4
        %s345 = scalar_lea.vmem %s4, %s344
        %p346 = pneg %p159
        %p347 = pneg %p156
        %p348 = pneg %p180
        %p349 = pneg %p177
        %p350 = pneg %p201
        %p351 = pneg %p198
        %p352 = pneg %p222
        %p353 = pneg %p219
        %p354 = pneg %p248
        %p355 = pneg %p245
        %s356 = sand.u32 %s235, 1
        %s357 = scalar_lea.sflag [#allocation4], %s356
        %s358 = sand.u32 %s235, 1
        %s359 = smul.addr %s358, 8
        %s360 = scalar_lea.vmem [#allocation3], %s359
        %p361 = scmp.lt.s32.totalorder %s26, 1
        %s362 = scalar_select %p361, %s26, 1
        %s363 = smul.addr %s362, 8
        %s364 = scalar_lea.vmem %s0, %s363
        %p365 = scmp.lt.s32.totalorder %s26, 1
        %s366 = scalar_select %p365, %s26, 1
        %s367 = scalar_lea.vmem %s1, %s366
        %p368 = scmp.lt.s32.totalorder %s27, 3
        %s369 = scalar_select %p368, %s27, 3
        %s370 = smul.addr %s369, 4
        %s371 = smul.addr %s370, 4
        %s372 = scalar_lea.vmem %s2, %s371
        %p373 = scmp.lt.s32.totalorder %s27, 3
        %s374 = scalar_select %p373, %s27, 3
        %s375 = smul.addr %s374, 4
        %s376 = scalar_lea.vmem %s3, %s375
        %p377 = scmp.lt.s32.totalorder %s27, 3
        %s378 = scalar_select %p377, %s27, 3
        %s379 = smul.addr %s378, 4
        %s380 = scalar_lea.vmem %s4, %s379
        %p382 = scmp.eq.s32.totalorder %s27, 0
        // Predicated region
        $region53: #{tpu_custom_call.1} parent=51 // pred_check
          %p383 = pneg %p382
        $region54: #{tpu_custom_call.1} parent=51 // pred_check_branch
          %385 = sbr.rel (%p383) target = $region56
        $region55: #{tpu_custom_call.1} parent=51 // pred_region
          %vm386 = vcmask 261120
          %387 = vst.msk [vmem:[#allocation2] sm:$0xff] %vm386, 0.0
        $region56: #{tpu_custom_call.1} parent=51 // pred_fallthru
          _
        %v388 = vld [vmem:[%s364] sm:$0xff]
        %v389 = vpack.c.bf16 %v388, %v388
        %v390 = vld [vmem:[%s372] sm:$0xf]
        %v391 = vld [vmem:[%s372 + $0x4] sm:$0xf]
        %v392 = vld [vmem:[%s372 + $0x8] sm:$0xf]
        %v393 = vld [vmem:[%s372 + $0xc] sm:$0xf]
        %v398 = vunpack.c.l.b16 %v390
        %v399 = vunpack.c.l.b16 %v391
        %v400 = vunpack.c.l.b16 %v392
        %v401 = vunpack.c.l.b16 %v393
        %v402 = vpack.c.b16 %v399, %v398
        %v403 = vpack.c.b16 %v401, %v400
        %vm406 = vcmask 261120
        %v408 = vsel %vm406, %v389, 0
        %410 = vmatprep.subr.bf16.mxu0 0
        %411 = vmatpush1.bf16.msra.mxu0 0
        %412 = vmatprep.subr.bf16.mxu0 0
        %413 = vmatpush1.bf16.msra.mxu0 0
        %414 = vmatprep.subr.bf16.mxu0 0
        %415 = vmatpush1.bf16.msra.mxu0 0
        %416 = vmatprep.subr.bf16.mxu0 0
        %417 = vmatpush1.bf16.msra.mxu0 0
        %418 = vmatprep.subr.bf16.mxu0 0
        %419 = vmatpush1.bf16.msra.mxu0 0
        %420 = vmatprep.subr.bf16.mxu0 0
        %421 = vmatpush1.bf16.msra.mxu0 0
        %422 = vmatprep.subr.bf16.mxu0 0
        %423 = vmatpush1.bf16.msra.mxu0 %v403
        %424 = vmatprep.subr.bf16.mxu0 0
        %425 = vmatpush1.bf16.msra.mxu0 %v402
        %426 = vmatprep.subr.bf16.mxu0 0
        %427 = vmatpush2.bf16.msra.mxu0 0
        %428 = vmatprep.subr.bf16.mxu0 0
        %429 = vmatpush2.bf16.msra.mxu0 0
        %430 = vmatprep.subr.bf16.mxu0 0
        %431 = vmatpush2.bf16.msra.mxu0 0
        %432 = vmatprep.subr.bf16.mxu0 0
        %433 = vmatpush2.bf16.msra.mxu0 0
        %434 = vmatprep.subr.bf16.mxu0 0
        %435 = vmatpush2.bf16.msra.mxu0 0
        %436 = vmatprep.subr.bf16.mxu0 0
        %437 = vmatpush2.bf16.msra.mxu0 0
        %438 = vmatprep.subr.bf16.mxu0 0
        %439 = vmatpush2.bf16.msra.mxu0 0
        %440 = vmatprep.subr.bf16.mxu0 0
        %441 = vmatpush2.bf16.msra.mxu0 0
        %442 = vmatprep.mubr.bf16.mxu0 0
        %443 = vmatmul.mubr.bf16.gmra.mxu0 %v408
        %v444 = vpop.f32.mrf.mxu0
        %v445 = vadd.f32 0.0, %v444
        %v446 = vpop.f32.mrf.mxu0
        %v447 = vpop.f32.mrf.mxu0
        %v448 = vpop.f32.mrf.mxu0
        %449 = vdwg.mxu0
        %v450 = vld [vmem:[%s376] sm:$0x7]
        %v451 = vlaneseq
        %v452 = vshrl.u32 %v451, 7
        %v453 = vsub.s32 0, %v452
        %v454 = vrot.slane %v450, %v453
        %v455 = vadd.f32 %v445, %v454
        %v456 = vlaneseq
        %v457 = vshrl.u32 %v456, 7
        %v458 = vsub.s32 1, %v457
        %v459 = vrot.slane %v450, %v458
        %461 = vrot.lane.b32.xlu0 %v459, 8
        %v462 = vpop.permute.xlu0 %461
        %v464 = vadd.f32 %v445, %v462
        %v465 = vlaneseq
        %v466 = vshrl.u32 %v465, 7
        %v467 = vsub.s32 2, %v466
        %v468 = vrot.slane %v450, %v467
        %470 = vrot.lane.b32.xlu0 %v468, 16
        %v471 = vpop.permute.xlu0 %470
        %v473 = vadd.f32 %v445, %v471
        %v474 = vpack.c.bf16 %v455, %v455
        %v475 = vpack.c.bf16 %v464, %v464
        %v476 = vld [vmem:[%s367] sm:$0x1]
        %v478 = vlaneseq
        %v479 = vshrl.u32 %v478, 7
        %v480 = vsub.s32 0, %v479
        %v481 = vrot.slane %v476, %v480
        %484 = vrot.lane.b32.xlu0 %v475, 120
        %v485 = vpop.permute.xlu0 %484
        %vm486 = vcmask 64512
        %v488 = vsel %vm486, %v474, 0
        %v491 = vsel %vm486, %v485, 0
        %493 = vmatprep.subr.bf16.mxu0 0
        %494 = vmatpush1.bf16.xpose.msra.mxu0 0
        %495 = vmatprep.subr.bf16.mxu0 0
        %496 = vmatpush1.bf16.xpose.msra.mxu0 0
        %497 = vmatprep.subr.bf16.mxu0 0
        %498 = vmatpush1.bf16.xpose.msra.mxu0 0
        %499 = vmatprep.subr.bf16.mxu0 0
        %500 = vmatpush1.bf16.xpose.msra.mxu0 0
        %501 = vmatprep.subr.bf16.mxu0 0
        %502 = vmatpush1.bf16.xpose.msra.mxu0 0
        %503 = vmatprep.subr.bf16.mxu0 0
        %504 = vmatpush1.bf16.xpose.msra.mxu0 0
        %505 = vmatprep.subr.bf16.mxu0 0
        %506 = vmatpush1.bf16.xpose.msra.mxu0 0
        %507 = vmatprep.subr.bf16.mxu0 0
        %508 = vmatpush1.bf16.xpose.msra.mxu0 %v491
        %509 = vmatprep.subr.bf16.mxu0 0
        %510 = vmatpush2.bf16.xpose.msra.mxu0 0
        %511 = vmatprep.subr.bf16.mxu0 0
        %512 = vmatpush2.bf16.xpose.msra.mxu0 0
        %513 = vmatprep.subr.bf16.mxu0 0
        %514 = vmatpush2.bf16.xpose.msra.mxu0 0
        %515 = vmatprep.subr.bf16.mxu0 0
        %516 = vmatpush2.bf16.xpose.msra.mxu0 0
        %517 = vmatprep.subr.bf16.mxu0 0
        %518 = vmatpush2.bf16.xpose.msra.mxu0 0
        %519 = vmatprep.subr.bf16.mxu0 0
        %520 = vmatpush2.bf16.xpose.msra.mxu0 0
        %521 = vmatprep.subr.bf16.mxu0 0
        %522 = vmatpush2.bf16.xpose.msra.mxu0 0
        %523 = vmatprep.subr.bf16.mxu0 0
        %524 = vmatpush2.bf16.xpose.msra.mxu0 0
        %525 = vmatprep.mubr.bf16.mxu0 0
        %526 = vmatmul.mubr.bf16.gmra.mxu0 %v488
        %v527 = vpop.f32.mrf.mxu0
        %v528 = vadd.f32 %v481, %v527
        %v529 = vpop.f32.mrf.mxu0
        %v530 = vpop.f32.mrf.mxu0
        %v531 = vpop.f32.mrf.mxu0
        %532 = vdwg.mxu0
        %v533 = vsel %vm486, %v528, -inf
        %534 = vmax.xlane.f32.xlu0 %v533
        %v535 = vpop.xlane.xlu0 %534
        %v536 = vsub.f32 %v528, %v535
        %v537 = vmul.f32 %v536, 1.442695
        %v538 = vpow.pop %v537
        %v539 = vsel %vm486, %v538, 0.0
        %540 = vadd.xlane.f32.xlu0 %v539
        %v541 = vpop.xlane.xlu0 %540
        %v542 = vpack.c.bf16 %v538, %v538
        %v543 = vpack.c.bf16 %v473, %v473
        %545 = vrot.lane.b32.xlu0 %v543, 112
        %v546 = vpop.permute.xlu0 %545
        %v548 = vsel %vm486, %v542, 0
        %vm550 = vcmask 1043456
        %v552 = vsel %vm550, %v546, 0
        %554 = vmatprep.subr.bf16.mxu0 0
        %555 = vmatpush1.bf16.msra.mxu0 0
        %556 = vmatprep.subr.bf16.mxu0 0
        %557 = vmatpush1.bf16.msra.mxu0 0
        %558 = vmatprep.subr.bf16.mxu0 0
        %559 = vmatpush1.bf16.msra.mxu0 0
        %560 = vmatprep.subr.bf16.mxu0 0
        %561 = vmatpush1.bf16.msra.mxu0 0
        %562 = vmatprep.subr.bf16.mxu0 0
        %563 = vmatpush1.bf16.msra.mxu0 0
        %564 = vmatprep.subr.bf16.mxu0 0
        %565 = vmatpush1.bf16.msra.mxu0 0
        %566 = vmatprep.subr.bf16.mxu0 0
        %567 = vmatpush1.bf16.msra.mxu0 0
        %568 = vmatprep.subr.bf16.mxu0 0
        %569 = vmatpush1.bf16.msra.mxu0 %v552
        %570 = vmatprep.subr.bf16.mxu0 0
        %571 = vmatpush2.bf16.msra.mxu0 0
        %572 = vmatprep.subr.bf16.mxu0 0
        %573 = vmatpush2.bf16.msra.mxu0 0
        %574 = vmatprep.subr.bf16.mxu0 0
        %575 = vmatpush2.bf16.msra.mxu0 0
        %576 = vmatprep.subr.bf16.mxu0 0
        %577 = vmatpush2.bf16.msra.mxu0 0
        %578 = vmatprep.subr.bf16.mxu0 0
        %579 = vmatpush2.bf16.msra.mxu0 0
        %580 = vmatprep.subr.bf16.mxu0 0
        %581 = vmatpush2.bf16.msra.mxu0 0
        %582 = vmatprep.subr.bf16.mxu0 0
        %583 = vmatpush2.bf16.msra.mxu0 0
        %584 = vmatprep.subr.bf16.mxu0 0
        %585 = vmatpush2.bf16.msra.mxu0 0
        %586 = vmatprep.mubr.bf16.mxu0 0
        %587 = vmatmul.mubr.bf16.gmra.mxu0 %v548
        %v588 = vpop.f32.mrf.mxu0
        %v589 = vadd.f32 0.0, %v588
        %v590 = vpop.f32.mrf.mxu0
        %v591 = vpop.f32.mrf.mxu0
        %v592 = vpop.f32.mrf.mxu0
        %593 = vdwg.mxu0
        %v594 = vrcp.pop %v541
        %v595 = vmul.f32 %v589, %v594
        %v596 = vld [vmem:[#allocation2] sm:$0xff]
        %v597 = vpack.c.bf16 %v595, %v595
        %v598 = vld [vmem:[%s380] sm:$0xf]
        %v600 = vsel %vm486, %v597, 0
        %v603 = vsel %vm550, %v598, 0
        %605 = vmatprep.subr.bf16.mxu0 0
        %606 = vmatpush1.bf16.msra.mxu0 0
        %607 = vmatprep.subr.bf16.mxu0 0
        %608 = vmatpush1.bf16.msra.mxu0 0
        %609 = vmatprep.subr.bf16.mxu0 0
        %610 = vmatpush1.bf16.msra.mxu0 0
        %611 = vmatprep.subr.bf16.mxu0 0
        %612 = vmatpush1.bf16.msra.mxu0 0
        %613 = vmatprep.subr.bf16.mxu0 0
        %614 = vmatpush1.bf16.msra.mxu0 0
        %615 = vmatprep.subr.bf16.mxu0 0
        %616 = vmatpush1.bf16.msra.mxu0 0
        %617 = vmatprep.subr.bf16.mxu0 0
        %618 = vmatpush1.bf16.msra.mxu0 0
        %619 = vmatprep.subr.bf16.mxu0 0
        %620 = vmatpush1.bf16.msra.mxu0 %v603
        %621 = vmatprep.subr.bf16.mxu0 0
        %622 = vmatpush2.bf16.msra.mxu0 0
        %623 = vmatprep.subr.bf16.mxu0 0
        %624 = vmatpush2.bf16.msra.mxu0 0
        %625 = vmatprep.subr.bf16.mxu0 0
        %626 = vmatpush2.bf16.msra.mxu0 0
        %627 = vmatprep.subr.bf16.mxu0 0
        %628 = vmatpush2.bf16.msra.mxu0 0
        %629 = vmatprep.subr.bf16.mxu0 0
        %630 = vmatpush2.bf16.msra.mxu0 0
        %631 = vmatprep.subr.bf16.mxu0 0
        %632 = vmatpush2.bf16.msra.mxu0 0
        %633 = vmatprep.subr.bf16.mxu0 0
        %634 = vmatpush2.bf16.msra.mxu0 0
        %635 = vmatprep.subr.bf16.mxu0 0
        %636 = vmatpush2.bf16.msra.mxu0 0
        %637 = vmatprep.mubr.bf16.mxu0 0
        %638 = vmatmul.mubr.bf16.gmra.mxu0 %v600
        %v639 = vpop.f32.mrf.mxu0
        %v640 = vadd.f32 0.0, %v639
        %v641 = vpop.f32.mrf.mxu0
        %v642 = vpop.f32.mrf.mxu0
        %v643 = vpop.f32.mrf.mxu0
        %644 = vdwg.mxu0
        %v645 = vadd.f32 %v596, %v640
        %646 = vst.msk [vmem:[#allocation2] sm:$0xff] %vm406, %v645
        %p647 = scmp.eq.s32.totalorder %s27, 3
        // Predicated region
        $region57: #{tpu_custom_call.1} parent=51 // pred_check
          %p648 = pneg %p647
        $region58: #{tpu_custom_call.1} parent=51 // pred_check_branch
          %650 = sbr.rel (%p648) target = $region60
        $region59: #{tpu_custom_call.1} parent=51 // pred_region
          %v651 = vld [vmem:[#allocation2] sm:$0xff]
          %v652 = vld [vmem:[%s5] sm:$0x1]
          %v654 = vlaneseq
          %v655 = vshrl.u32 %v654, 7
          %v656 = vsub.s32 0, %v655
          %v657 = vrot.slane %v652, %v656
          %v659 = vadd.f32 %v651, %v657
          %v660 = vadd.f32 %v659, %v388
          %v661 = vsel %vm406, %v660, 0.0
          %662 = vadd.xlane.f32.xlu0 %v661
          %v663 = vpop.xlane.xlu0 %662
          %v664 = vrcp.pop 32.0
          %v665 = vmul.f32 %v663, %v664
          %v666 = vsub.f32 %v660, %v665
          %v667 = vmul.f32 %v666, %v666
          %v668 = vsel %vm406, %v667, 0.0
          %669 = vadd.xlane.f32.xlu0 %v668
          %v670 = vpop.xlane.xlu0 %669
          %v671 = vmul.f32 %v670, %v664
          %v672 = vadd.f32 %v671, 1e-12
          %v673 = vrsqrt.pop %v672
          %v674 = vmul.f32 %v666, %v673
          %v675 = vld [vmem:[%s6] sm:$0x1]
          %v677 = vlaneseq
          %v678 = vshrl.u32 %v677, 7
          %v679 = vsub.s32 0, %v678
          %v680 = vrot.slane %v675, %v679
          %v682 = vmul.f32 %v674, %v680
          %v683 = vld [vmem:[%s7] sm:$0x1]
          %v685 = vlaneseq
          %v686 = vshrl.u32 %v685, 7
          %v687 = vsub.s32 0, %v686
          %v688 = vrot.slane %v683, %v687
          %v690 = vadd.f32 %v682, %v688
          %691 = vst.msk [vmem:[%s360] sm:$0xff] %vm406, %v690
        $region60: #{tpu_custom_call.1} parent=51 // pred_fallthru
          _
        %s692 = sand.u32 %s235, 1
        %s693 = scalar_lea.sflag [#allocation4], %s692
        %s694 = sand.u32 %s235, 1
        %s695 = smul.addr %s694, 8
        %s696 = scalar_lea.vmem [#allocation3], %s695
        // Predicated region
        $region61: #{tpu_custom_call.1} parent=51 // pred_check
          %p697 = pneg %p245
        $region62: #{tpu_custom_call.1} parent=51 // pred_check_branch
          %699 = sbr.rel (%p697) target = $region64
        $region63: #{tpu_custom_call.1} parent=51 // pred_region
          %s701 = ssub.s32 128, 128
          %702 = vsyncadd %s693, %s701
          %s703 = smul.addr %s26, 128
          %s704 = scalar_lea.hbm %s8, %s703
          %s706 = sshll.u32 %s696, 4
          %s707 = int_to_ptr.vmem [resolvable:$true] %s706
          %709 = dma.vmem_to_hbm [thread:$0]  %s707, 128, %s704, %s693
        $region64: #{tpu_custom_call.1} parent=51 // pred_fallthru
          _
      $region52: #{tpu_custom_call.1} parent=5 // pred_fallthru
        _
      %p710 = scmp.le.s32.totalorder 2, %s17
      // Predicated region
      $region65: #{tpu_custom_call.1} parent=5 // pred_check
        %p711 = pneg %p710
      $region66: #{tpu_custom_call.1} parent=5 // pred_check_branch
        %713 = sbr.rel (%p711) target = $region68
      $region67: #{tpu_custom_call.1} parent=5 // pred_region
        %s714 = ssub.s32 %s17, 2
        // Predicated region
        $region69: #{tpu_custom_call.1} parent=67 // pred_check
          %p715 = pneg %p251
        $region70: #{tpu_custom_call.1} parent=67 // pred_check_branch
          %717 = sbr.rel (%p715) target = $region72
        $region71: #{tpu_custom_call.1} parent=67 // pred_region
          %s718 = sand.u32 %s236, 1
          %s719 = scalar_lea.sflag [#allocation4], %s718
          %s720 = sand.u32 %s236, 1
          %s721 = smul.addr %s720, 8
          %s722 = scalar_lea.vmem [#allocation3], %s721
          %723 = dma.done %s719, 128
        $region72: #{tpu_custom_call.1} parent=67 // pred_fallthru
          _
      $region68: #{tpu_custom_call.1} parent=5 // pred_fallthru
        _
    $region6: #{tpu_custom_call.1} parent=1 // loop_footer
      %s21 = sadd.s32 1, %s17
    $region7: #{tpu_custom_call.1} parent=1 // loop_footer_branch
      %16 = sbr.rel target = $region3
    $region8: #{tpu_custom_call.1} parent=1 // loop_exit
      _
    %724 = vsyncpa [#allocation4], 1
    %s725 = scalar_lea.sflag [#allocation4], 1
    %726 = vsyncpa %s725, 1

</llo_original>
